<compile_context>
chip_gen: v6e
topology: v6e:2x2x1
jax: 0.10.0
libtpu: 0.0.40
codegen_flags: <defaults>
</compile_context>

<pallas_src>
import jax
import jax.numpy as jnp
from jax.experimental import pallas as pl
from jax.experimental.pallas import tpu as pltpu

STATE_DIM = 11
ACTION_DIM = 3
ACTION_PAD = 128          # lane-dense padded output width
MAX_ACTION = 1.0
H1 = 400
H2 = 300
DEFAULT_TB = 512          # batch tile (>= 8, multiple of 8)


def _round_up(x, m):
    return ((x + m - 1) // m) * m


def actor_kernel(x_ref, w1_ref, b1_ref, w2_ref, b2_ref, w3_ref, b3_ref, o_ref):
    # x: (TB, STATE_DIM) f32 ; w*: bf16 ; b*: f32 ; o: (TB, ACTION_PAD) f32
    x = x_ref[...].astype(jnp.bfloat16)

    # layer 1: Linear(state_dim, 400) + ReLU   (bf16 MXU, f32 accumulate)
    h = jnp.dot(x, w1_ref[...], preferred_element_type=jnp.float32) + b1_ref[...]
    h = jnp.maximum(h, 0.0)

    # layer 2: Linear(400, 300) + ReLU
    h = jnp.dot(h.astype(jnp.bfloat16), w2_ref[...],
                preferred_element_type=jnp.float32) + b2_ref[...]
    h = jnp.maximum(h, 0.0)

    # layer 3: Linear(300, action_dim padded to 128) -> tanh -> * max_action
    a = jnp.dot(h.astype(jnp.bfloat16), w3_ref[...],
                preferred_element_type=jnp.float32) + b3_ref[...]
    o_ref[...] = jnp.tanh(a) * MAX_ACTION


def actor_forward(state, params, *, tb=DEFAULT_TB):
    w1, b1, w2, b2, w3, b3 = params
    B = state.shape[0]

    # Batch tile: multiple of 8, no larger than needed for small batches.
    TB = min(tb, _round_up(B, 8))
    B_pad = pl.cdiv(B, TB) * TB
    if B_pad != B:
        state = jnp.pad(state, ((0, B_pad - B), (0, 0)))

    const2d = lambda i: (0, 0)   # weights/biases: fetched once, VMEM-resident

    out = pl.pallas_call(
        actor_kernel,
        out_shape=jax.ShapeDtypeStruct((B_pad, ACTION_PAD), jnp.float32),
        grid=(B_pad // TB,),
        in_specs=[
            pl.BlockSpec((TB, STATE_DIM), lambda i: (i, 0)),   # state tile
            pl.BlockSpec((STATE_DIM, H1), const2d),            # w1 (bf16)
            pl.BlockSpec((1, H1), const2d),                    # b1 (f32)
            pl.BlockSpec((H1, H2), const2d),                   # w2 (bf16)
            pl.BlockSpec((1, H2), const2d),                    # b2 (f32)
            pl.BlockSpec((H2, ACTION_PAD), const2d),           # w3 padded (bf16)
            pl.BlockSpec((1, ACTION_PAD), const2d),            # b3 padded (f32)
        ],
        out_specs=pl.BlockSpec((TB, ACTION_PAD), lambda i: (i, 0)),
        compiler_params=pltpu.CompilerParams(
            dimension_semantics=("parallel",)),
    )(state, w1, b1, w2, b2, w3, b3)

    return out[:B, :ACTION_DIM]


def init_params(key):
    """nn.Linear-style init (uniform(-1/sqrt(fan_in), +)); weights stored bf16,
    biases f32; layer-3 weight/bias zero-padded to ACTION_PAD output columns."""
    ks = jax.random.split(key, 6)

    def linear(kw, kb, fan_in, fan_out, pad_out=None):
        bound = 1.0 / jnp.sqrt(jnp.float32(fan_in))
        w = jax.random.uniform(kw, (fan_in, fan_out), jnp.float32, -bound, bound)
        b = jax.random.uniform(kb, (1, fan_out), jnp.float32, -bound, bound)
        if pad_out is not None and pad_out > fan_out:
            w = jnp.pad(w, ((0, 0), (0, pad_out - fan_out)))
            b = jnp.pad(b, ((0, 0), (0, pad_out - fan_out)))
        return w.astype(jnp.bfloat16), b.astype(jnp.float32)

    w1, b1 = linear(ks[0], ks[1], STATE_DIM, H1)
    w2, b2 = linear(ks[2], ks[3], H1, H2)
    w3, b3 = linear(ks[4], ks[5], H2, ACTION_DIM, pad_out=ACTION_PAD)
    return (w1, b1, w2, b2, w3, b3)


def actor_reference(state, params):
    """Pure-JAX reference following the same bf16-input / f32-accumulate path."""
    w1, b1, w2, b2, w3, b3 = params
    h = jnp.dot(state.astype(jnp.bfloat16), w1,
                preferred_element_type=jnp.float32) + b1
    h = jnp.maximum(h, 0.0)
    h = jnp.dot(h.astype(jnp.bfloat16), w2,
                preferred_element_type=jnp.float32) + b2
    h = jnp.maximum(h, 0.0)
    a = jnp.dot(h.astype(jnp.bfloat16), w3,
                preferred_element_type=jnp.float32) + b3
    return (jnp.tanh(a) * MAX_ACTION)[:, :ACTION_DIM]


if __name__ == "__main__":
    key = jax.random.PRNGKey(0)
    kparams, kstate = jax.random.split(key)
    params = init_params(kparams)

    # Small batch (single grid step, tile rounded up to a multiple of 8).
    batch = 8
    state = jax.random.normal(kstate, (batch, STATE_DIM), jnp.float32)
    out = jax.block_until_ready(actor_forward(state, params))
    ref = actor_reference(state, params)
    assert out.shape == (batch, ACTION_DIM)
    assert jnp.allclose(out, ref, atol=1e-3, rtol=1e-3)

    # Larger, non-multiple batch to exercise tiling + tail padding.
    batch2 = 260
    state2 = jax.random.normal(jax.random.PRNGKey(1), (batch2, STATE_DIM),
                               jnp.float32)
    out2 = jax.block_until_ready(actor_forward(state2, params))
    ref2 = actor_reference(state2, params)
    assert out2.shape == (batch2, ACTION_DIM)
    assert jnp.allclose(out2, ref2, atol=1e-3, rtol=1e-3)

    print("KERNEL_OK")
</pallas_src>

<mosaic_0001>
module attributes {stable_mosaic.version = 11 : i64} {
  func.func @actor_kernel(%arg0: i32, %arg1: memref<8x11xf32, #tpu.memory_space<vmem>>, %arg2: memref<11x400xbf16, #tpu.memory_space<vmem>>, %arg3: memref<1x400xf32, #tpu.memory_space<vmem>>, %arg4: memref<400x300xbf16, #tpu.memory_space<vmem>>, %arg5: memref<1x300xf32, #tpu.memory_space<vmem>>, %arg6: memref<300x128xbf16, #tpu.memory_space<vmem>>, %arg7: memref<1x128xf32, #tpu.memory_space<vmem>>, %arg8: memref<8x128xf32, #tpu.memory_space<vmem>>) attributes {dimension_semantics = [#tpu.dimension_semantics<parallel>], iteration_bounds = array<i64: 1>, scalar_prefetch = 0 : i64, scratch_operands = 0 : i64, tpu.core_type = #tpu.core_type<tc>, window_params = [{transform_indices = @transform_0, window_bounds = array<i64: 8, 11>}, {pipeline_mode = #tpu.pipeline_mode<synchronous>, transform_indices = @transform_1, window_bounds = array<i64: 11, 400>}, {pipeline_mode = #tpu.pipeline_mode<synchronous>, transform_indices = @transform_2, window_bounds = array<i64: 1, 400>}, {pipeline_mode = #tpu.pipeline_mode<synchronous>, transform_indices = @transform_3, window_bounds = array<i64: 400, 300>}, {pipeline_mode = #tpu.pipeline_mode<synchronous>, transform_indices = @transform_4, window_bounds = array<i64: 1, 300>}, {pipeline_mode = #tpu.pipeline_mode<synchronous>, transform_indices = @transform_5, window_bounds = array<i64: 300, 128>}, {pipeline_mode = #tpu.pipeline_mode<synchronous>, transform_indices = @transform_6, window_bounds = array<i64: 1, 128>}, {transform_indices = @transform_7, window_bounds = array<i64: 8, 128>}]} {
    %c0 = arith.constant 0 : index
    %c0_0 = arith.constant 0 : index
    %0 = vector.load %arg1[%c0, %c0_0] : memref<8x11xf32, #tpu.memory_space<vmem>>, vector<8x11xf32>
    %1 = arith.truncf %0 : vector<8x11xf32> to vector<8x11xbf16>
    %c0_1 = arith.constant 0 : index
    %c0_2 = arith.constant 0 : index
    %2 = vector.load %arg2[%c0_1, %c0_2] : memref<11x400xbf16, #tpu.memory_space<vmem>>, vector<11x400xbf16>
    %cst = arith.constant dense<0.000000e+00> : vector<8x400xf32>
    %3 = tpu.matmul %1, %2, %cst {dimension_numbers = #tpu.dot_dimension_numbers<[1], [0], [0], [1], [0, 0, 1, 1], [], []>} : vector<8x11xbf16>, vector<11x400xbf16>, vector<8x400xf32> -> vector<8x400xf32>
    %c0_3 = arith.constant 0 : index
    %c0_4 = arith.constant 0 : index
    %4 = vector.load %arg3[%c0_3, %c0_4] : memref<1x400xf32, #tpu.memory_space<vmem>>, vector<1x400xf32>
    %5 = vector.broadcast %4 : vector<1x400xf32> to vector<8x400xf32>
    %6 = arith.addf %3, %5 : vector<8x400xf32>
    %cst_5 = arith.constant 0.000000e+00 : f32
    %7 = vector.broadcast %cst_5 : f32 to vector<8x400xf32>
    %8 = arith.maximumf %6, %7 : vector<8x400xf32>
    %9 = arith.truncf %8 : vector<8x400xf32> to vector<8x400xbf16>
    %c0_6 = arith.constant 0 : index
    %c0_7 = arith.constant 0 : index
    %10 = vector.load %arg4[%c0_6, %c0_7] : memref<400x300xbf16, #tpu.memory_space<vmem>>, vector<400x300xbf16>
    %cst_8 = arith.constant dense<0.000000e+00> : vector<8x300xf32>
    %11 = tpu.matmul %9, %10, %cst_8 {dimension_numbers = #tpu.dot_dimension_numbers<[1], [0], [0], [1], [0, 0, 1, 1], [], []>} : vector<8x400xbf16>, vector<400x300xbf16>, vector<8x300xf32> -> vector<8x300xf32>
    %c0_9 = arith.constant 0 : index
    %c0_10 = arith.constant 0 : index
    %12 = vector.load %arg5[%c0_9, %c0_10] : memref<1x300xf32, #tpu.memory_space<vmem>>, vector<1x300xf32>
    %13 = vector.broadcast %12 : vector<1x300xf32> to vector<8x300xf32>
    %14 = arith.addf %11, %13 : vector<8x300xf32>
    %cst_11 = arith.constant 0.000000e+00 : f32
    %15 = vector.broadcast %cst_11 : f32 to vector<8x300xf32>
    %16 = arith.maximumf %14, %15 : vector<8x300xf32>
    %17 = arith.truncf %16 : vector<8x300xf32> to vector<8x300xbf16>
    %c0_12 = arith.constant 0 : index
    %c0_13 = arith.constant 0 : index
    %18 = vector.load %arg6[%c0_12, %c0_13] : memref<300x128xbf16, #tpu.memory_space<vmem>>, vector<300x128xbf16>
    %cst_14 = arith.constant dense<0.000000e+00> : vector<8x128xf32>
    %19 = tpu.matmul %17, %18, %cst_14 {dimension_numbers = #tpu.dot_dimension_numbers<[1], [0], [0], [1], [0, 0, 1, 1], [], []>} : vector<8x300xbf16>, vector<300x128xbf16>, vector<8x128xf32> -> vector<8x128xf32>
    %c0_15 = arith.constant 0 : index
    %c0_16 = arith.constant 0 : index
    %20 = vector.load %arg7[%c0_15, %c0_16] : memref<1x128xf32, #tpu.memory_space<vmem>>, vector<1x128xf32>
    %21 = vector.broadcast %20 : vector<1x128xf32> to vector<8x128xf32>
    %22 = arith.addf %19, %21 : vector<8x128xf32>
    %23 = math.tanh %22 : vector<8x128xf32>
    %cst_17 = arith.constant 1.000000e+00 : f32
    %24 = vector.broadcast %cst_17 : f32 to vector<8x128xf32>
    %25 = arith.mulf %23, %24 : vector<8x128xf32>
    %c0_18 = arith.constant 0 : index
    %c0_19 = arith.constant 0 : index
    %26 = vector.load %arg8[%c0_18, %c0_19] : memref<8x128xf32, #tpu.memory_space<vmem>>, vector<8x128xf32>
    tpu.vector_store %arg8[%c0_18, %c0_19], %25 {strides = array<i32>} : memref<8x128xf32, #tpu.memory_space<vmem>>, vector<8x128xf32>,
    return
  }
  func.func @transform_0(%arg0: i32) -> (i32, i32) {
    %c0_i32 = arith.constant 0 : i32
    %c0_i32_0 = arith.constant 0 : i32
    return %arg0, %c0_i32 : i32, i32
  }
  func.func @transform_1(%arg0: i32) -> (i32, i32) {
    %c0_i32 = arith.constant 0 : i32
    %c0_i32_0 = arith.constant 0 : i32
    %c0_i32_1 = arith.constant 0 : i32
    return %c0_i32, %c0_i32_0 : i32, i32
  }
  func.func @transform_2(%arg0: i32) -> (i32, i32) {
    %c0_i32 = arith.constant 0 : i32
    %c0_i32_0 = arith.constant 0 : i32
    %c0_i32_1 = arith.constant 0 : i32
    return %c0_i32, %c0_i32_0 : i32, i32
  }
  func.func @transform_3(%arg0: i32) -> (i32, i32) {
    %c0_i32 = arith.constant 0 : i32
    %c0_i32_0 = arith.constant 0 : i32
    %c0_i32_1 = arith.constant 0 : i32
    return %c0_i32, %c0_i32_0 : i32, i32
  }
  func.func @transform_4(%arg0: i32) -> (i32, i32) {
    %c0_i32 = arith.constant 0 : i32
    %c0_i32_0 = arith.constant 0 : i32
    %c0_i32_1 = arith.constant 0 : i32
    return %c0_i32, %c0_i32_0 : i32, i32
  }
  func.func @transform_5(%arg0: i32) -> (i32, i32) {
    %c0_i32 = arith.constant 0 : i32
    %c0_i32_0 = arith.constant 0 : i32
    %c0_i32_1 = arith.constant 0 : i32
    return %c0_i32, %c0_i32_0 : i32, i32
  }
  func.func @transform_6(%arg0: i32) -> (i32, i32) {
    %c0_i32 = arith.constant 0 : i32
    %c0_i32_0 = arith.constant 0 : i32
    %c0_i32_1 = arith.constant 0 : i32
    return %c0_i32, %c0_i32_0 : i32, i32
  }
  func.func @transform_7(%arg0: i32) -> (i32, i32) {
    %c0_i32 = arith.constant 0 : i32
    %c0_i32_0 = arith.constant 0 : i32
    return %arg0, %c0_i32 : i32, i32
  }
}

</mosaic_0001>

<llo_original>
// kernel: tpu_custom_call.1
$region0: #{tpu_custom_call.1}
  #allocation0 [shape = 'u32[]', space=smem, size = 0x4, offset = 0x4, fixed_abs, tag = 'smem constant byte address 0x4 - core index']
  #allocation1 [shape = 'u32[144,128]{1,0:T(1,128)}', space=vmem, size = 0x12000, scoped, tag = 'internal scratch']
  %s0 = inlined_call_operand.hbm [shape: f32[8,11], index: 0, kind: input, shape index: {}]
  %s1 = inlined_call_operand.hbm [shape: bf16[11,400], index: 1, kind: input, shape index: {}]
  %s2 = inlined_call_operand.hbm [shape: f32[1,400], index: 2, kind: input, shape index: {}]
  %s3 = inlined_call_operand.hbm [shape: bf16[400,300], index: 3, kind: input, shape index: {}]
  %s4 = inlined_call_operand.vmem [shape: f32[1,300], index: 4, kind: input, shape index: {}]
  %s5 = inlined_call_operand.hbm [shape: bf16[300,128], index: 5, kind: input, shape index: {}]
  %s6 = inlined_call_operand.vmem [shape: f32[1,128], index: 6, kind: input, shape index: {}]
  %s7 = inlined_call_operand.hbm [shape: f32[8,128], index: 7, kind: output, shape index: {}]
  %s8 = sld [smem:[#allocation0]]
  $region58: #{tpu_custom_call.1} parent=0
    _
  %s10 = ssub.s32 1, %s8
  %s11 = scalar_select 0, %s10, %s8
  $region1: #{tpu_custom_call.1} parent=0
    #allocation2 [shape = 'u8[4096]{0}', space=vmem, size = 0x1000, scoped, tag = 'input window, operand 0, single buffered']
    #allocation3 [shape = 's32[1]{0}', space=sflag, size = 0x4, scoped, tag = 'scoped memory for tpu_custom_call.1']
    #allocation4 [shape = 's32[1]{0}', space=sflag, size = 0x4, scoped, tag = 'scoped memory for tpu_custom_call.1']
    #allocation5 [shape = 'u8[16384]{0}', space=vmem, size = 0x4000, scoped, tag = 'input window, operand 1, single buffered']
    #allocation6 [shape = 's32[1]{0}', space=sflag, size = 0x4, scoped, tag = 'scoped memory for tpu_custom_call.1']
    #allocation7 [shape = 'u8[2048]{0}', space=vmem, size = 0x800, scoped, tag = 'input window, operand 2, single buffered']
    #allocation8 [shape = 'u8[307200]{0}', space=vmem, size = 0x4b000, scoped, tag = 'input window, operand 3, single buffered']
    #allocation9 [shape = 's32[1]{0}', space=sflag, size = 0x4, scoped, tag = 'scoped memory for tpu_custom_call.1']
    #allocation10 [shape = 'u8[77824]{0}', space=vmem, size = 0x13000, scoped, tag = 'input window, operand 5, single buffered']
    #allocation11 [shape = 'u8[4096]{0}', space=vmem, size = 0x1000, scoped, tag = 'output window, operand 0, single buffered']
    %12 = vsyncpa [#allocation3], 0
    %13 = vsyncpa [#allocation6], 0
    %14 = vsyncpa [#allocation9], 0
    %15 = vsyncpa [#allocation4], 0
    // Predicated region
    $region2: #{tpu_custom_call.1} parent=1 // pred_check
      _
    $region3: #{tpu_custom_call.1} parent=1 // pred_check_branch
      %17 = sbr.rel (0) target = $region5
    $region4: #{tpu_custom_call.1} parent=1 // pred_region
      %s19 = ssub.s32 128, 128
      %20 = vsyncadd [#allocation3], %s19
      %s22 = sshll.u32 [#allocation2], 4
      %s23 = int_to_ptr.vmem [resolvable:$true] %s22
      %25 = dma.hbm_to_vmem [thread:$0]  %s0, 128, %s23, [#allocation3]
    $region5: #{tpu_custom_call.1} parent=1 // pred_fallthru
      _
    // Predicated region
    $region6: #{tpu_custom_call.1} parent=1 // pred_check
      _
    $region7: #{tpu_custom_call.1} parent=1 // pred_check_branch
      %27 = sbr.rel (0) target = $region9
    $region8: #{tpu_custom_call.1} parent=1 // pred_region
      %s29 = ssub.s32 512, 512
      %30 = vsyncadd [#allocation6], %s29
      %s31 = sshll.u32 [#allocation5], 4
      %s32 = int_to_ptr.vmem [resolvable:$true] %s31
      %37 = dma.hbm_to_vmem [thread:$0]  %s1, 512, %s32, [#allocation6], 256, 256, 16
    $region9: #{tpu_custom_call.1} parent=1 // pred_fallthru
      _
    // Predicated region
    $region10: #{tpu_custom_call.1} parent=1 // pred_check
      _
    $region11: #{tpu_custom_call.1} parent=1 // pred_check_branch
      %39 = sbr.rel (0) target = $region13
    $region12: #{tpu_custom_call.1} parent=1 // pred_region
      %s41 = ssub.s32 64, 64
      %42 = vsyncadd [#allocation6], %s41
      %s44 = sshll.u32 [#allocation7], 4
      %s45 = int_to_ptr.vmem [resolvable:$true] %s44
      %47 = dma.hbm_to_vmem [thread:$0]  %s2, 64, %s45, [#allocation6]
    $region13: #{tpu_custom_call.1} parent=1 // pred_fallthru
      _
    // Predicated region
    $region14: #{tpu_custom_call.1} parent=1 // pred_check
      _
    $region15: #{tpu_custom_call.1} parent=1 // pred_check_branch
      %49 = sbr.rel (0) target = $region17
    $region16: #{tpu_custom_call.1} parent=1 // pred_region
      %s51 = ssub.s32 9600, 9600
      %52 = vsyncadd [#allocation9], %s51
      %s53 = sshll.u32 [#allocation8], 4
      %s54 = int_to_ptr.vmem [resolvable:$true] %s53
      %59 = dma.hbm_to_vmem [thread:$0]  %s3, 9600, %s54, [#allocation9], 192, 192, 12
    $region17: #{tpu_custom_call.1} parent=1 // pred_fallthru
      _
    // Predicated region
    $region18: #{tpu_custom_call.1} parent=1 // pred_check
      _
    $region19: #{tpu_custom_call.1} parent=1 // pred_check_branch
      %61 = sbr.rel (0) target = $region21
    $region20: #{tpu_custom_call.1} parent=1 // pred_region
      _
    $region21: #{tpu_custom_call.1} parent=1 // pred_fallthru
      _
    // Predicated region
    $region22: #{tpu_custom_call.1} parent=1 // pred_check
      _
    $region23: #{tpu_custom_call.1} parent=1 // pred_check_branch
      %63 = sbr.rel (0) target = $region25
    $region24: #{tpu_custom_call.1} parent=1 // pred_region
      %s65 = ssub.s32 2432, 2432
      %66 = vsyncadd [#allocation9], %s65
      %s67 = sshll.u32 [#allocation10], 4
      %s68 = int_to_ptr.vmem [resolvable:$true] %s67
      %73 = dma.hbm_to_vmem [thread:$0]  %s5, 2432, %s68, [#allocation9], 64, 64, 4
    $region25: #{tpu_custom_call.1} parent=1 // pred_fallthru
      _
    // Predicated region
    $region26: #{tpu_custom_call.1} parent=1 // pred_check
      _
    $region27: #{tpu_custom_call.1} parent=1 // pred_check_branch
      %75 = sbr.rel (0) target = $region29
    $region28: #{tpu_custom_call.1} parent=1 // pred_region
      _
    $region29: #{tpu_custom_call.1} parent=1 // pred_fallthru
      _
    // Predicated region
    $region30: #{tpu_custom_call.1} parent=1 // pred_check
      _
    $region31: #{tpu_custom_call.1} parent=1 // pred_check_branch
      %77 = sbr.rel (0) target = $region33
    $region32: #{tpu_custom_call.1} parent=1 // pred_region
      %78 = dma.done [#allocation3], 128
    $region33: #{tpu_custom_call.1} parent=1 // pred_fallthru
      _
    // Predicated region
    $region34: #{tpu_custom_call.1} parent=1 // pred_check
      _
    $region35: #{tpu_custom_call.1} parent=1 // pred_check_branch
      %80 = sbr.rel (0) target = $region37
    $region36: #{tpu_custom_call.1} parent=1 // pred_region
      %81 = dma.done [#allocation6], 512
    $region37: #{tpu_custom_call.1} parent=1 // pred_fallthru
      _
    // Predicated region
    $region38: #{tpu_custom_call.1} parent=1 // pred_check
      _
    $region39: #{tpu_custom_call.1} parent=1 // pred_check_branch
      %83 = sbr.rel (0) target = $region41
    $region40: #{tpu_custom_call.1} parent=1 // pred_region
      %84 = dma.done [#allocation6], 64
    $region41: #{tpu_custom_call.1} parent=1 // pred_fallthru
      _
    // Predicated region
    $region42: #{tpu_custom_call.1} parent=1 // pred_check
      _
    $region43: #{tpu_custom_call.1} parent=1 // pred_check_branch
      %86 = sbr.rel (0) target = $region45
    $region44: #{tpu_custom_call.1} parent=1 // pred_region
      %87 = dma.done [#allocation9], 9600
    $region45: #{tpu_custom_call.1} parent=1 // pred_fallthru
      _
    // Predicated region
    $region46: #{tpu_custom_call.1} parent=1 // pred_check
      _
    $region47: #{tpu_custom_call.1} parent=1 // pred_check_branch
      %89 = sbr.rel (0) target = $region49
    $region48: #{tpu_custom_call.1} parent=1 // pred_region
      %90 = dma.done [#allocation9], 2432
    $region49: #{tpu_custom_call.1} parent=1 // pred_fallthru
      _
    %v92 = vld [vmem:[#allocation2] sm:$0xff]
    %v93 = vpack.c.bf16 %v92, %v92
    %v94 = vld [vmem:[#allocation5] sm:$0xff]
    %v95 = vld [vmem:[#allocation5 + $0x8] sm:$0xff]
    %v96 = vld [vmem:[#allocation5 + $0x10] sm:$0x33]
    %v97 = vld [vmem:[#allocation5 + $0x18] sm:$0x33]
    %v98 = vld [vmem:[#allocation7] sm:$0xf]
    %v100 = vlaneseq
    %v101 = vshrl.u32 %v100, 7
    %v102 = vsub.s32 0, %v101
    %v103 = vrot.slane %v98, %v102
    %v104 = vlaneseq
    %v105 = vshrl.u32 %v104, 7
    %v106 = vsub.s32 1, %v105
    %v107 = vrot.slane %v98, %v106
    %v108 = vlaneseq
    %v109 = vshrl.u32 %v108, 7
    %v110 = vsub.s32 2, %v109
    %v111 = vrot.slane %v98, %v110
    %v112 = vlaneseq
    %v113 = vshrl.u32 %v112, 7
    %v114 = vsub.s32 3, %v113
    %v115 = vrot.slane %v98, %v114
    %v124 = vunpack.c.l.b16 %v94
    %v125 = vunpack.c.h.b16 %v94
    %v126 = vunpack.c.l.b16 %v95
    %v127 = vunpack.c.h.b16 %v95
    %v128 = vunpack.c.l.b16 %v96
    %v129 = vunpack.c.h.b16 %v96
    %v130 = vunpack.c.l.b16 %v97
    %v131 = vunpack.c.h.b16 %v97
    %v132 = vpack.c.b16 %v128, %v124
    %v133 = vpack.c.b16 %v129, %v125
    %v134 = vpack.c.b16 %v130, %v126
    %v135 = vpack.c.b16 %v131, %v127
    %vm136 = vcmask 89088
    %v138 = vsel %vm136, %v93, 0
    %vm140 = vcmask 1044480
    %vm141 = vcmask 1045504
    %v142 = vsel %vm140, 4294967295, 65535
    %v143 = vsel %vm141, %v142, 0
    %v145 = vand.u32 %v132, %v143
    %v148 = vand.u32 %v133, %v143
    %v151 = vand.u32 %v134, %v143
    %v154 = vand.u32 %v135, %v143
    %156 = vmatprep.subr.bf16.mxu0 0
    %157 = vmatpush1.bf16.msra.mxu0 0
    %158 = vmatprep.subr.bf16.mxu0 0
    %159 = vmatpush1.bf16.msra.mxu0 0
    %160 = vmatprep.subr.bf16.mxu0 0
    %161 = vmatpush1.bf16.msra.mxu0 0
    %162 = vmatprep.subr.bf16.mxu0 0
    %163 = vmatpush1.bf16.msra.mxu0 0
    %164 = vmatprep.subr.bf16.mxu0 0
    %165 = vmatpush1.bf16.msra.mxu0 0
    %166 = vmatprep.subr.bf16.mxu0 0
    %167 = vmatpush1.bf16.msra.mxu0 0
    %168 = vmatprep.subr.bf16.mxu0 0
    %169 = vmatpush1.bf16.msra.mxu0 0
    %170 = vmatprep.subr.bf16.mxu0 %v148
    %171 = vmatpush1.bf16.msra.mxu0 %v145
    %172 = vmatprep.subr.bf16.mxu0 0
    %173 = vmatpush2.bf16.msra.mxu0 0
    %174 = vmatprep.subr.bf16.mxu0 0
    %175 = vmatpush2.bf16.msra.mxu0 0
    %176 = vmatprep.subr.bf16.mxu0 0
    %177 = vmatpush2.bf16.msra.mxu0 0
    %178 = vmatprep.subr.bf16.mxu0 0
    %179 = vmatpush2.bf16.msra.mxu0 0
    %180 = vmatprep.subr.bf16.mxu0 0
    %181 = vmatpush2.bf16.msra.mxu0 0
    %182 = vmatprep.subr.bf16.mxu0 0
    %183 = vmatpush2.bf16.msra.mxu0 0
    %184 = vmatprep.subr.bf16.mxu0 0
    %185 = vmatpush2.bf16.msra.mxu0 0
    %186 = vmatprep.subr.bf16.mxu0 0
    %187 = vmatpush2.bf16.msra.mxu0 0
    %188 = vmatprep.mubr.bf16.mxu0 0
    %189 = vmatmul.mubr.bf16.gmra.mxu0 %v138
    %v190 = vpop.f32.mrf.mxu0
    %v191 = vadd.f32 %v103, %v190
    %v192 = vpop.f32.mrf.mxu0
    %v193 = vadd.f32 %v107, %v192
    %v194 = vpop.f32.mrf.mxu0
    %v195 = vpop.f32.mrf.mxu0
    %196 = vdwg.mxu0
    %197 = vmatprep.subr.bf16.mxu0 0
    %198 = vmatpush1.bf16.msra.mxu0 0
    %199 = vmatprep.subr.bf16.mxu0 0
    %200 = vmatpush1.bf16.msra.mxu0 0
    %201 = vmatprep.subr.bf16.mxu0 0
    %202 = vmatpush1.bf16.msra.mxu0 0
    %203 = vmatprep.subr.bf16.mxu0 0
    %204 = vmatpush1.bf16.msra.mxu0 0
    %205 = vmatprep.subr.bf16.mxu0 0
    %206 = vmatpush1.bf16.msra.mxu0 0
    %207 = vmatprep.subr.bf16.mxu0 0
    %208 = vmatpush1.bf16.msra.mxu0 0
    %209 = vmatprep.subr.bf16.mxu0 0
    %210 = vmatpush1.bf16.msra.mxu0 0
    %211 = vmatprep.subr.bf16.mxu0 %v154
    %212 = vmatpush1.bf16.msra.mxu0 %v151
    %213 = vmatprep.subr.bf16.mxu0 0
    %214 = vmatpush2.bf16.msra.mxu0 0
    %215 = vmatprep.subr.bf16.mxu0 0
    %216 = vmatpush2.bf16.msra.mxu0 0
    %217 = vmatprep.subr.bf16.mxu0 0
    %218 = vmatpush2.bf16.msra.mxu0 0
    %219 = vmatprep.subr.bf16.mxu0 0
    %220 = vmatpush2.bf16.msra.mxu0 0
    %221 = vmatprep.subr.bf16.mxu0 0
    %222 = vmatpush2.bf16.msra.mxu0 0
    %223 = vmatprep.subr.bf16.mxu0 0
    %224 = vmatpush2.bf16.msra.mxu0 0
    %225 = vmatprep.subr.bf16.mxu0 0
    %226 = vmatpush2.bf16.msra.mxu0 0
    %227 = vmatprep.subr.bf16.mxu0 0
    %228 = vmatpush2.bf16.msra.mxu0 0
    %229 = vmatprep.mubr.bf16.mxu0 0
    %230 = vmatmul.mubr.bf16.gmra.mxu0 %v138
    %v231 = vpop.f32.mrf.mxu0
    %v232 = vadd.f32 %v111, %v231
    %v233 = vpop.f32.mrf.mxu0
    %v234 = vadd.f32 %v115, %v233
    %v235 = vpop.f32.mrf.mxu0
    %v236 = vpop.f32.mrf.mxu0
    %237 = vdwg.mxu0
    %v238 = vmax.f32 %v191, 0.0
    %v239 = vmax.f32 %v193, 0.0
    %v240 = vmax.f32 %v232, 0.0
    %v241 = vmax.f32 %v234, 0.0
    %v242 = vpack.c.bf16 %v238, %v238
    %v243 = vpack.c.bf16 %v239, %v239
    %v244 = vpack.c.bf16 %v240, %v240
    %v245 = vpack.c.bf16 %v241, %v241
    %v246 = vld [vmem:[#allocation8] sm:$0xff]
    %v247 = vld [vmem:[#allocation8 + $0x8] sm:$0xf]
    %v248 = vld [vmem:[#allocation8 + $0xc] sm:$0xff]
    %v249 = vld [vmem:[#allocation8 + $0x14] sm:$0xf]
    %v250 = vld [vmem:[#allocation8 + $0x18] sm:$0xff]
    %v251 = vld [vmem:[#allocation8 + $0x20] sm:$0xf]
    %v252 = vld [vmem:[#allocation8 + $0x24] sm:$0xff]
    %v253 = vld [vmem:[#allocation8 + $0x2c] sm:$0xf]
    %v254 = vld [vmem:[#allocation8 + $0x30] sm:$0xff]
    %v255 = vld [vmem:[#allocation8 + $0x38] sm:$0xf]
    %v256 = vld [vmem:[#allocation8 + $0x3c] sm:$0xff]
    %v257 = vld [vmem:[#allocation8 + $0x44] sm:$0xf]
    %v258 = vld [vmem:[#allocation8 + $0x48] sm:$0xff]
    %v259 = vld [vmem:[#allocation8 + $0x50] sm:$0xf]
    %v260 = vld [vmem:[#allocation8 + $0x54] sm:$0xff]
    %v261 = vld [vmem:[#allocation8 + $0x5c] sm:$0xf]
    %v262 = vld [vmem:[#allocation8 + $0x60] sm:$0xff]
    %v263 = vld [vmem:[#allocation8 + $0x68] sm:$0xf]
    %v264 = vld [vmem:[#allocation8 + $0x6c] sm:$0xff]
    %v265 = vld [vmem:[#allocation8 + $0x74] sm:$0xf]
    %v266 = vld [vmem:[#allocation8 + $0x78] sm:$0xff]
    %v267 = vld [vmem:[#allocation8 + $0x80] sm:$0xf]
    %v268 = vld [vmem:[#allocation8 + $0x84] sm:$0xff]
    %v269 = vld [vmem:[#allocation8 + $0x8c] sm:$0xf]
    %v270 = vld [vmem:[#allocation8 + $0x90] sm:$0xff]
    %v271 = vld [vmem:[#allocation8 + $0x98] sm:$0xf]
    %v272 = vld [vmem:[#allocation8 + $0x9c] sm:$0xff]
    %v273 = vld [vmem:[#allocation8 + $0xa4] sm:$0xf]
    %v274 = vld [vmem:[#allocation8 + $0xa8] sm:$0xff]
    %v275 = vld [vmem:[#allocation8 + $0xb0] sm:$0xf]
    %v276 = vld [vmem:[#allocation8 + $0xb4] sm:$0xff]
    %v277 = vld [vmem:[#allocation8 + $0xbc] sm:$0xf]
    %v278 = vld [vmem:[#allocation8 + $0xc0] sm:$0xff]
    %v279 = vld [vmem:[#allocation8 + $0xc8] sm:$0xf]
    %v280 = vld [vmem:[#allocation8 + $0xcc] sm:$0xff]
    %v281 = vld [vmem:[#allocation8 + $0xd4] sm:$0xf]
    %v282 = vld [vmem:[#allocation8 + $0xd8] sm:$0xff]
    %v283 = vld [vmem:[#allocation8 + $0xe0] sm:$0xf]
    %v284 = vld [vmem:[#allocation8 + $0xe4] sm:$0xff]
    %v285 = vld [vmem:[#allocation8 + $0xec] sm:$0xf]
    %v286 = vld [vmem:[#allocation8 + $0xf0] sm:$0xff]
    %v287 = vld [vmem:[#allocation8 + $0xf8] sm:$0xf]
    %v288 = vld [vmem:[#allocation8 + $0xfc] sm:$0xff]
    %v289 = vld [vmem:[#allocation8 + $0x104] sm:$0xf]
    %v290 = vld [vmem:[#allocation8 + $0x108] sm:$0xff]
    %v291 = vld [vmem:[#allocation8 + $0x110] sm:$0xf]
    %v292 = vld [vmem:[#allocation8 + $0x114] sm:$0xff]
    %v293 = vld [vmem:[#allocation8 + $0x11c] sm:$0xf]
    %v294 = vld [vmem:[#allocation8 + $0x120] sm:$0xff]
    %v295 = vld [vmem:[#allocation8 + $0x128] sm:$0xf]
    %v296 = vld [vmem:[#allocation8 + $0x12c] sm:$0xff]
    %v297 = vld [vmem:[#allocation8 + $0x134] sm:$0xf]
    %v298 = vld [vmem:[#allocation8 + $0x138] sm:$0xff]
    %v299 = vld [vmem:[#allocation8 + $0x140] sm:$0xf]
    %v300 = vld [vmem:[#allocation8 + $0x144] sm:$0xff]
    %v301 = vld [vmem:[#allocation8 + $0x14c] sm:$0xf]
    %v302 = vld [vmem:[#allocation8 + $0x150] sm:$0xff]
    %v303 = vld [vmem:[#allocation8 + $0x158] sm:$0xf]
    %v304 = vld [vmem:[#allocation8 + $0x15c] sm:$0xff]
    %v305 = vld [vmem:[#allocation8 + $0x164] sm:$0xf]
    %v306 = vld [vmem:[#allocation8 + $0x168] sm:$0xff]
    %v307 = vld [vmem:[#allocation8 + $0x170] sm:$0xf]
    %v308 = vld [vmem:[#allocation8 + $0x174] sm:$0xff]
    %v309 = vld [vmem:[#allocation8 + $0x17c] sm:$0xf]
    %v310 = vld [vmem:[#allocation8 + $0x180] sm:$0xff]
    %v311 = vld [vmem:[#allocation8 + $0x188] sm:$0xf]
    %v312 = vld [vmem:[#allocation8 + $0x18c] sm:$0xff]
    %v313 = vld [vmem:[#allocation8 + $0x194] sm:$0xf]
    %v314 = vld [vmem:[#allocation8 + $0x198] sm:$0xff]
    %v315 = vld [vmem:[#allocation8 + $0x1a0] sm:$0xf]
    %v316 = vld [vmem:[#allocation8 + $0x1a4] sm:$0xff]
    %v317 = vld [vmem:[#allocation8 + $0x1ac] sm:$0xf]
    %v318 = vld [vmem:[#allocation8 + $0x1b0] sm:$0xff]
    %v319 = vld [vmem:[#allocation8 + $0x1b8] sm:$0xf]
    %v320 = vld [vmem:[#allocation8 + $0x1bc] sm:$0xff]
    %v321 = vld [vmem:[#allocation8 + $0x1c4] sm:$0xf]
    %v322 = vld [vmem:[#allocation8 + $0x1c8] sm:$0xff]
    %v323 = vld [vmem:[#allocation8 + $0x1d0] sm:$0xf]
    %v324 = vld [vmem:[#allocation8 + $0x1d4] sm:$0xff]
    %v325 = vld [vmem:[#allocation8 + $0x1dc] sm:$0xf]
    %v326 = vld [vmem:[#allocation8 + $0x1e0] sm:$0xff]
    %v327 = vld [vmem:[#allocation8 + $0x1e8] sm:$0xf]
    %v328 = vld [vmem:[#allocation8 + $0x1ec] sm:$0xff]
    %v329 = vld [vmem:[#allocation8 + $0x1f4] sm:$0xf]
    %v330 = vld [vmem:[#allocation8 + $0x1f8] sm:$0xff]
    %v331 = vld [vmem:[#allocation8 + $0x200] sm:$0xf]
    %v332 = vld [vmem:[#allocation8 + $0x204] sm:$0xff]
    %v333 = vld [vmem:[#allocation8 + $0x20c] sm:$0xf]
    %v334 = vld [vmem:[#allocation8 + $0x210] sm:$0xff]
    %v335 = vld [vmem:[#allocation8 + $0x218] sm:$0xf]
    %v336 = vld [vmem:[#allocation8 + $0x21c] sm:$0xff]
    %v337 = vld [vmem:[#allocation8 + $0x224] sm:$0xf]
    %v338 = vld [vmem:[#allocation8 + $0x228] sm:$0xff]
    %v339 = vld [vmem:[#allocation8 + $0x230] sm:$0xf]
    %v340 = vld [vmem:[#allocation8 + $0x234] sm:$0xff]
    %v341 = vld [vmem:[#allocation8 + $0x23c] sm:$0xf]
    %v342 = vld [vmem:[#allocation8 + $0x240] sm:$0xff]
    %v343 = vld [vmem:[#allocation8 + $0x248] sm:$0xf]
    %v344 = vld [vmem:[#allocation8 + $0x24c] sm:$0xff]
    %v345 = vld [vmem:[#allocation8 + $0x254] sm:$0xf]
    %v346 = vld [vmem:[%s4] sm:$0x7]
    %v348 = vlaneseq
    %v349 = vshrl.u32 %v348, 7
    %v350 = vsub.s32 0, %v349
    %v351 = vrot.slane %v346, %v350
    %v352 = vlaneseq
    %v353 = vshrl.u32 %v352, 7
    %v354 = vsub.s32 1, %v353
    %v355 = vrot.slane %v346, %v354
    %v356 = vlaneseq
    %v357 = vshrl.u32 %v356, 7
    %v358 = vsub.s32 2, %v357
    %v359 = vrot.slane %v346, %v358
    %v463 = vunpack.c.l.b16 %v246
    %v464 = vunpack.c.h.b16 %v246
    %v465 = vunpack.c.l.b16 %v247
    %v466 = vunpack.c.l.b16 %v248
    %v467 = vunpack.c.h.b16 %v248
    %v468 = vunpack.c.l.b16 %v249
    %v469 = vunpack.c.l.b16 %v250
    %v470 = vunpack.c.h.b16 %v250
    %v471 = vunpack.c.l.b16 %v251
    %v472 = vunpack.c.l.b16 %v252
    %v473 = vunpack.c.h.b16 %v252
    %v474 = vunpack.c.l.b16 %v253
    %v475 = vunpack.c.l.b16 %v254
    %v476 = vunpack.c.h.b16 %v254
    %v477 = vunpack.c.l.b16 %v255
    %v478 = vunpack.c.l.b16 %v256
    %v479 = vunpack.c.h.b16 %v256
    %v480 = vunpack.c.l.b16 %v257
    %v481 = vunpack.c.l.b16 %v258
    %v482 = vunpack.c.h.b16 %v258
    %v483 = vunpack.c.l.b16 %v259
    %v484 = vunpack.c.l.b16 %v260
    %v485 = vunpack.c.h.b16 %v260
    %v486 = vunpack.c.l.b16 %v261
    %v487 = vunpack.c.l.b16 %v262
    %v488 = vunpack.c.h.b16 %v262
    %v489 = vunpack.c.l.b16 %v263
    %v490 = vunpack.c.l.b16 %v264
    %v491 = vunpack.c.h.b16 %v264
    %v492 = vunpack.c.l.b16 %v265
    %v493 = vunpack.c.l.b16 %v266
    %v494 = vunpack.c.h.b16 %v266
    %v495 = vunpack.c.l.b16 %v267
    %v496 = vunpack.c.l.b16 %v268
    %v497 = vunpack.c.h.b16 %v268
    %v498 = vunpack.c.l.b16 %v269
    %v499 = vunpack.c.l.b16 %v270
    %v500 = vunpack.c.h.b16 %v270
    %v501 = vunpack.c.l.b16 %v271
    %v502 = vunpack.c.l.b16 %v272
    %v503 = vunpack.c.h.b16 %v272
    %v504 = vunpack.c.l.b16 %v273
    %v505 = vunpack.c.l.b16 %v274
    %v506 = vunpack.c.h.b16 %v274
    %v507 = vunpack.c.l.b16 %v275
    %v508 = vunpack.c.l.b16 %v276
    %v509 = vunpack.c.h.b16 %v276
    %v510 = vunpack.c.l.b16 %v277
    %v511 = vunpack.c.l.b16 %v278
    %v512 = vunpack.c.h.b16 %v278
    %v513 = vunpack.c.l.b16 %v279
    %v514 = vunpack.c.l.b16 %v280
    %v515 = vunpack.c.h.b16 %v280
    %v516 = vunpack.c.l.b16 %v281
    %v517 = vunpack.c.l.b16 %v282
    %v518 = vunpack.c.h.b16 %v282
    %v519 = vunpack.c.l.b16 %v283
    %v520 = vunpack.c.l.b16 %v284
    %v521 = vunpack.c.h.b16 %v284
    %v522 = vunpack.c.l.b16 %v285
    %v523 = vunpack.c.l.b16 %v286
    %v524 = vunpack.c.h.b16 %v286
    %v525 = vunpack.c.l.b16 %v287
    %v526 = vunpack.c.l.b16 %v288
    %v527 = vunpack.c.h.b16 %v288
    %v528 = vunpack.c.l.b16 %v289
    %v529 = vunpack.c.l.b16 %v290
    %v530 = vunpack.c.h.b16 %v290
    %v531 = vunpack.c.l.b16 %v291
    %v532 = vunpack.c.l.b16 %v292
    %v533 = vunpack.c.h.b16 %v292
    %v534 = vunpack.c.l.b16 %v293
    %v535 = vunpack.c.l.b16 %v294
    %v536 = vunpack.c.h.b16 %v294
    %v537 = vunpack.c.l.b16 %v295
    %v538 = vunpack.c.l.b16 %v296
    %v539 = vunpack.c.h.b16 %v296
    %v540 = vunpack.c.l.b16 %v297
    %v541 = vunpack.c.l.b16 %v298
    %v542 = vunpack.c.h.b16 %v298
    %v543 = vunpack.c.l.b16 %v299
    %v544 = vunpack.c.l.b16 %v300
    %v545 = vunpack.c.h.b16 %v300
    %v546 = vunpack.c.l.b16 %v301
    %v547 = vunpack.c.l.b16 %v302
    %v548 = vunpack.c.h.b16 %v302
    %v549 = vunpack.c.l.b16 %v303
    %v550 = vunpack.c.l.b16 %v304
    %v551 = vunpack.c.h.b16 %v304
    %v552 = vunpack.c.l.b16 %v305
    %v553 = vunpack.c.l.b16 %v306
    %v554 = vunpack.c.h.b16 %v306
    %v555 = vunpack.c.l.b16 %v307
    %v556 = vunpack.c.l.b16 %v308
    %v557 = vunpack.c.h.b16 %v308
    %v558 = vunpack.c.l.b16 %v309
    %v559 = vunpack.c.l.b16 %v310
    %v560 = vunpack.c.h.b16 %v310
    %v561 = vunpack.c.l.b16 %v311
    %v562 = vunpack.c.l.b16 %v312
    %v563 = vunpack.c.h.b16 %v312
    %v564 = vunpack.c.l.b16 %v313
    %v565 = vunpack.c.l.b16 %v314
    %v566 = vunpack.c.h.b16 %v314
    %v567 = vunpack.c.l.b16 %v315
    %v568 = vunpack.c.l.b16 %v316
    %v569 = vunpack.c.h.b16 %v316
    %v570 = vunpack.c.l.b16 %v317
    %v571 = vunpack.c.l.b16 %v318
    %v572 = vunpack.c.h.b16 %v318
    %v573 = vunpack.c.l.b16 %v319
    %v574 = vunpack.c.l.b16 %v320
    %v575 = vunpack.c.h.b16 %v320
    %v576 = vunpack.c.l.b16 %v321
    %v577 = vunpack.c.l.b16 %v322
    %v578 = vunpack.c.h.b16 %v322
    %v579 = vunpack.c.l.b16 %v323
    %v580 = vunpack.c.l.b16 %v324
    %v581 = vunpack.c.h.b16 %v324
    %v582 = vunpack.c.l.b16 %v325
    %v583 = vunpack.c.l.b16 %v326
    %v584 = vunpack.c.h.b16 %v326
    %v585 = vunpack.c.l.b16 %v327
    %v586 = vunpack.c.l.b16 %v328
    %v587 = vunpack.c.h.b16 %v328
    %v588 = vunpack.c.l.b16 %v329
    %v589 = vunpack.c.l.b16 %v330
    %v590 = vunpack.c.h.b16 %v330
    %v591 = vunpack.c.l.b16 %v331
    %v592 = vunpack.c.l.b16 %v332
    %v593 = vunpack.c.h.b16 %v332
    %v594 = vunpack.c.l.b16 %v333
    %v595 = vunpack.c.l.b16 %v334
    %v596 = vunpack.c.h.b16 %v334
    %v597 = vunpack.c.l.b16 %v335
    %v598 = vunpack.c.l.b16 %v336
    %v599 = vunpack.c.h.b16 %v336
    %v600 = vunpack.c.l.b16 %v337
    %v601 = vunpack.c.l.b16 %v338
    %v602 = vunpack.c.h.b16 %v338
    %v603 = vunpack.c.l.b16 %v339
    %v604 = vunpack.c.l.b16 %v340
    %v605 = vunpack.c.h.b16 %v340
    %v606 = vunpack.c.l.b16 %v341
    %v607 = vunpack.c.l.b16 %v342
    %v608 = vunpack.c.h.b16 %v342
    %v609 = vunpack.c.l.b16 %v343
    %v610 = vunpack.c.l.b16 %v344
    %v611 = vunpack.c.h.b16 %v344
    %v612 = vunpack.c.l.b16 %v345
    %v613 = vpack.c.b16 %v466, %v463
    %v614 = vpack.c.b16 %v467, %v464
    %v615 = vpack.c.b16 %v468, %v465
    %v616 = vpack.c.b16 %v472, %v469
    %v617 = vpack.c.b16 %v473, %v470
    %v618 = vpack.c.b16 %v474, %v471
    %v619 = vpack.c.b16 %v478, %v475
    %v620 = vpack.c.b16 %v479, %v476
    %v621 = vpack.c.b16 %v480, %v477
    %v622 = vpack.c.b16 %v484, %v481
    %v623 = vpack.c.b16 %v485, %v482
    %v624 = vpack.c.b16 %v486, %v483
    %v625 = vpack.c.b16 %v490, %v487
    %v626 = vpack.c.b16 %v491, %v488
    %v627 = vpack.c.b16 %v492, %v489
    %v628 = vpack.c.b16 %v496, %v493
    %v629 = vpack.c.b16 %v497, %v494
    %v630 = vpack.c.b16 %v498, %v495
    %v631 = vpack.c.b16 %v502, %v499
    %v632 = vpack.c.b16 %v503, %v500
    %v633 = vpack.c.b16 %v504, %v501
    %v634 = vpack.c.b16 %v508, %v505
    %v635 = vpack.c.b16 %v509, %v506
    %v636 = vpack.c.b16 %v510, %v507
    %v637 = vpack.c.b16 %v514, %v511
    %v638 = vpack.c.b16 %v515, %v512
    %v639 = vpack.c.b16 %v516, %v513
    %v640 = vpack.c.b16 %v520, %v517
    %v641 = vpack.c.b16 %v521, %v518
    %v642 = vpack.c.b16 %v522, %v519
    %v643 = vpack.c.b16 %v526, %v523
    %v644 = vpack.c.b16 %v527, %v524
    %v645 = vpack.c.b16 %v528, %v525
    %v646 = vpack.c.b16 %v532, %v529
    %v647 = vpack.c.b16 %v533, %v530
    %v648 = vpack.c.b16 %v534, %v531
    %v649 = vpack.c.b16 %v538, %v535
    %v650 = vpack.c.b16 %v539, %v536
    %v651 = vpack.c.b16 %v540, %v537
    %v652 = vpack.c.b16 %v544, %v541
    %v653 = vpack.c.b16 %v545, %v542
    %v654 = vpack.c.b16 %v546, %v543
    %v655 = vpack.c.b16 %v550, %v547
    %v656 = vpack.c.b16 %v551, %v548
    %v657 = vpack.c.b16 %v552, %v549
    %v658 = vpack.c.b16 %v556, %v553
    %v659 = vpack.c.b16 %v557, %v554
    %v660 = vpack.c.b16 %v558, %v555
    %v661 = vpack.c.b16 %v562, %v559
    %v662 = vpack.c.b16 %v563, %v560
    %v663 = vpack.c.b16 %v564, %v561
    %v664 = vpack.c.b16 %v568, %v565
    %v665 = vpack.c.b16 %v569, %v566
    %v666 = vpack.c.b16 %v570, %v567
    %v667 = vpack.c.b16 %v574, %v571
    %v668 = vpack.c.b16 %v575, %v572
    %v669 = vpack.c.b16 %v576, %v573
    %v670 = vpack.c.b16 %v580, %v577
    %v671 = vpack.c.b16 %v581, %v578
    %v672 = vpack.c.b16 %v582, %v579
    %v673 = vpack.c.b16 %v586, %v583
    %v674 = vpack.c.b16 %v587, %v584
    %v675 = vpack.c.b16 %v588, %v585
    %v676 = vpack.c.b16 %v592, %v589
    %v677 = vpack.c.b16 %v593, %v590
    %v678 = vpack.c.b16 %v594, %v591
    %v679 = vpack.c.b16 %v598, %v595
    %v680 = vpack.c.b16 %v599, %v596
    %v681 = vpack.c.b16 %v600, %v597
    %v682 = vpack.c.b16 %v604, %v601
    %v683 = vpack.c.b16 %v605, %v602
    %v684 = vpack.c.b16 %v606, %v603
    %v685 = vpack.c.b16 %v610, %v607
    %v686 = vpack.c.b16 %v611, %v608
    %v687 = vpack.c.b16 %v612, %v609
    %vm763 = vcmask 130048
    %v765 = vsel %vm763, %v245, 0
    %767 = vmatprep.subr.bf16.mxu0 %v635
    %768 = vmatpush1.bf16.msra.mxu0 %v634
    %769 = vmatprep.subr.bf16.mxu0 %v632
    %770 = vmatpush1.bf16.msra.mxu0 %v631
    %771 = vmatprep.subr.bf16.mxu0 %v629
    %772 = vmatpush1.bf16.msra.mxu0 %v628
    %773 = vmatprep.subr.bf16.mxu0 %v626
    %774 = vmatpush1.bf16.msra.mxu0 %v625
    %775 = vmatprep.subr.bf16.mxu0 %v623
    %776 = vmatpush1.bf16.msra.mxu0 %v622
    %777 = vmatprep.subr.bf16.mxu0 %v620
    %778 = vmatpush1.bf16.msra.mxu0 %v619
    %779 = vmatprep.subr.bf16.mxu0 %v617
    %780 = vmatpush1.bf16.msra.mxu0 %v616
    %781 = vmatprep.subr.bf16.mxu0 %v614
    %782 = vmatpush1.bf16.msra.mxu0 %v613
    %783 = vmatprep.subr.bf16.mxu0 %v659
    %784 = vmatpush2.bf16.msra.mxu0 %v658
    %785 = vmatprep.subr.bf16.mxu0 %v656
    %786 = vmatpush2.bf16.msra.mxu0 %v655
    %787 = vmatprep.subr.bf16.mxu0 %v653
    %788 = vmatpush2.bf16.msra.mxu0 %v652
    %789 = vmatprep.subr.bf16.mxu0 %v650
    %790 = vmatpush2.bf16.msra.mxu0 %v649
    %791 = vmatprep.subr.bf16.mxu0 %v647
    %792 = vmatpush2.bf16.msra.mxu0 %v646
    %793 = vmatprep.subr.bf16.mxu0 %v644
    %794 = vmatpush2.bf16.msra.mxu0 %v643
    %795 = vmatprep.subr.bf16.mxu0 %v641
    %796 = vmatpush2.bf16.msra.mxu0 %v640
    %797 = vmatprep.subr.bf16.mxu0 %v638
    %798 = vmatpush2.bf16.msra.mxu0 %v637
    %799 = vmatprep.mubr.bf16.mxu0 %v243
    %800 = vmatmul.mubr.bf16.gmra.mxu0 %v242
    %v801 = vpop.f32.mrf.mxu0
    %v802 = vadd.f32 %v351, %v801
    %v803 = vpop.f32.mrf.mxu0
    %v804 = vadd.f32 %v355, %v803
    %v805 = vpop.f32.mrf.mxu0
    %v806 = vpop.f32.mrf.mxu0
    %807 = vdwg.mxu0
    %808 = vmatprep.subr.bf16.mxu0 %v683
    %809 = vmatpush1.bf16.msra.mxu0 %v682
    %810 = vmatprep.subr.bf16.mxu0 %v680
    %811 = vmatpush1.bf16.msra.mxu0 %v679
    %812 = vmatprep.subr.bf16.mxu0 %v677
    %813 = vmatpush1.bf16.msra.mxu0 %v676
    %814 = vmatprep.subr.bf16.mxu0 %v674
    %815 = vmatpush1.bf16.msra.mxu0 %v673
    %816 = vmatprep.subr.bf16.mxu0 %v671
    %817 = vmatpush1.bf16.msra.mxu0 %v670
    %818 = vmatprep.subr.bf16.mxu0 %v668
    %819 = vmatpush1.bf16.msra.mxu0 %v667
    %820 = vmatprep.subr.bf16.mxu0 %v665
    %821 = vmatpush1.bf16.msra.mxu0 %v664
    %822 = vmatprep.subr.bf16.mxu0 %v662
    %823 = vmatpush1.bf16.msra.mxu0 %v661
    %824 = vmatprep.subr.bf16.mxu0 0
    %825 = vmatpush2.bf16.msra.mxu0 0
    %826 = vmatprep.subr.bf16.mxu0 0
    %827 = vmatpush2.bf16.msra.mxu0 0
    %828 = vmatprep.subr.bf16.mxu0 0
    %829 = vmatpush2.bf16.msra.mxu0 0
    %830 = vmatprep.subr.bf16.mxu0 0
    %831 = vmatpush2.bf16.msra.mxu0 0
    %832 = vmatprep.subr.bf16.mxu0 0
    %833 = vmatpush2.bf16.msra.mxu0 0
    %834 = vmatprep.subr.bf16.mxu0 0
    %835 = vmatpush2.bf16.msra.mxu0 0
    %836 = vmatprep.subr.bf16.mxu0 0
    %837 = vmatpush2.bf16.msra.mxu0 0
    %838 = vmatprep.subr.bf16.mxu0 %v686
    %839 = vmatpush2.bf16.msra.mxu0 %v685
    %840 = vmatprep.mubr.bf16.mxu0 %v765
    %841 = vmatmul.mubr.bf16.gmra.mxu0 %v244
    %v842 = vpop.f32.mrf.mxu0
    %v843 = vadd.f32 %v802, %v842
    %v844 = vpop.f32.mrf.mxu0
    %v845 = vadd.f32 %v804, %v844
    %v846 = vpop.f32.mrf.mxu0
    %v847 = vpop.f32.mrf.mxu0
    %848 = vdwg.mxu0
    %849 = vmatprep.subr.bf16.mxu0 0
    %850 = vmatpush1.bf16.msra.mxu0 %v636
    %851 = vmatprep.subr.bf16.mxu0 0
    %852 = vmatpush1.bf16.msra.mxu0 %v633
    %853 = vmatprep.subr.bf16.mxu0 0
    %854 = vmatpush1.bf16.msra.mxu0 %v630
    %855 = vmatprep.subr.bf16.mxu0 0
    %856 = vmatpush1.bf16.msra.mxu0 %v627
    %857 = vmatprep.subr.bf16.mxu0 0
    %858 = vmatpush1.bf16.msra.mxu0 %v624
    %859 = vmatprep.subr.bf16.mxu0 0
    %860 = vmatpush1.bf16.msra.mxu0 %v621
    %861 = vmatprep.subr.bf16.mxu0 0
    %862 = vmatpush1.bf16.msra.mxu0 %v618
    %863 = vmatprep.subr.bf16.mxu0 0
    %864 = vmatpush1.bf16.msra.mxu0 %v615
    %865 = vmatprep.subr.bf16.mxu0 0
    %866 = vmatpush2.bf16.msra.mxu0 %v660
    %867 = vmatprep.subr.bf16.mxu0 0
    %868 = vmatpush2.bf16.msra.mxu0 %v657
    %869 = vmatprep.subr.bf16.mxu0 0
    %870 = vmatpush2.bf16.msra.mxu0 %v654
    %871 = vmatprep.subr.bf16.mxu0 0
    %872 = vmatpush2.bf16.msra.mxu0 %v651
    %873 = vmatprep.subr.bf16.mxu0 0
    %874 = vmatpush2.bf16.msra.mxu0 %v648
    %875 = vmatprep.subr.bf16.mxu0 0
    %876 = vmatpush2.bf16.msra.mxu0 %v645
    %877 = vmatprep.subr.bf16.mxu0 0
    %878 = vmatpush2.bf16.msra.mxu0 %v642
    %879 = vmatprep.subr.bf16.mxu0 0
    %880 = vmatpush2.bf16.msra.mxu0 %v639
    %881 = vmatprep.mubr.bf16.mxu0 %v243
    %882 = vmatmul.mubr.bf16.gmra.mxu0 %v242
    %v883 = vpop.f32.mrf.mxu0
    %v884 = vadd.f32 %v359, %v883
    %v885 = vpop.f32.mrf.mxu0
    %v886 = vpop.f32.mrf.mxu0
    %v887 = vpop.f32.mrf.mxu0
    %888 = vdwg.mxu0
    %889 = vmatprep.subr.bf16.mxu0 0
    %890 = vmatpush1.bf16.msra.mxu0 %v684
    %891 = vmatprep.subr.bf16.mxu0 0
    %892 = vmatpush1.bf16.msra.mxu0 %v681
    %893 = vmatprep.subr.bf16.mxu0 0
    %894 = vmatpush1.bf16.msra.mxu0 %v678
    %895 = vmatprep.subr.bf16.mxu0 0
    %896 = vmatpush1.bf16.msra.mxu0 %v675
    %897 = vmatprep.subr.bf16.mxu0 0
    %898 = vmatpush1.bf16.msra.mxu0 %v672
    %899 = vmatprep.subr.bf16.mxu0 0
    %900 = vmatpush1.bf16.msra.mxu0 %v669
    %901 = vmatprep.subr.bf16.mxu0 0
    %902 = vmatpush1.bf16.msra.mxu0 %v666
    %903 = vmatprep.subr.bf16.mxu0 0
    %904 = vmatpush1.bf16.msra.mxu0 %v663
    %905 = vmatprep.subr.bf16.mxu0 0
    %906 = vmatpush2.bf16.msra.mxu0 0
    %907 = vmatprep.subr.bf16.mxu0 0
    %908 = vmatpush2.bf16.msra.mxu0 0
    %909 = vmatprep.subr.bf16.mxu0 0
    %910 = vmatpush2.bf16.msra.mxu0 0
    %911 = vmatprep.subr.bf16.mxu0 0
    %912 = vmatpush2.bf16.msra.mxu0 0
    %913 = vmatprep.subr.bf16.mxu0 0
    %914 = vmatpush2.bf16.msra.mxu0 0
    %915 = vmatprep.subr.bf16.mxu0 0
    %916 = vmatpush2.bf16.msra.mxu0 0
    %917 = vmatprep.subr.bf16.mxu0 0
    %918 = vmatpush2.bf16.msra.mxu0 0
    %919 = vmatprep.subr.bf16.mxu0 0
    %920 = vmatpush2.bf16.msra.mxu0 %v687
    %921 = vmatprep.mubr.bf16.mxu0 %v765
    %922 = vmatmul.mubr.bf16.gmra.mxu0 %v244
    %v923 = vpop.f32.mrf.mxu0
    %v924 = vadd.f32 %v884, %v923
    %v925 = vpop.f32.mrf.mxu0
    %v926 = vpop.f32.mrf.mxu0
    %v927 = vpop.f32.mrf.mxu0
    %928 = vdwg.mxu0
    %v929 = vmax.f32 %v843, 0.0
    %v930 = vmax.f32 %v845, 0.0
    %v931 = vmax.f32 %v924, 0.0
    %v932 = vpack.c.bf16 %v929, %v929
    %v933 = vpack.c.bf16 %v930, %v930
    %v934 = vpack.c.bf16 %v931, %v931
    %v935 = vld [vmem:[#allocation10] sm:$0xf]
    %v936 = vld [vmem:[#allocation10 + $0x4] sm:$0xf]
    %v937 = vld [vmem:[#allocation10 + $0x8] sm:$0xf]
    %v938 = vld [vmem:[#allocation10 + $0xc] sm:$0xf]
    %v939 = vld [vmem:[#allocation10 + $0x10] sm:$0xf]
    %v940 = vld [vmem:[#allocation10 + $0x14] sm:$0xf]
    %v941 = vld [vmem:[#allocation10 + $0x18] sm:$0xf]
    %v942 = vld [vmem:[#allocation10 + $0x1c] sm:$0xf]
    %v943 = vld [vmem:[#allocation10 + $0x20] sm:$0xf]
    %v944 = vld [vmem:[#allocation10 + $0x24] sm:$0xf]
    %v945 = vld [vmem:[#allocation10 + $0x28] sm:$0xf]
    %v946 = vld [vmem:[#allocation10 + $0x2c] sm:$0xf]
    %v947 = vld [vmem:[#allocation10 + $0x30] sm:$0xf]
    %v948 = vld [vmem:[#allocation10 + $0x34] sm:$0xf]
    %v949 = vld [vmem:[#allocation10 + $0x38] sm:$0xf]
    %v950 = vld [vmem:[#allocation10 + $0x3c] sm:$0xf]
    %v951 = vld [vmem:[#allocation10 + $0x40] sm:$0xf]
    %v952 = vld [vmem:[#allocation10 + $0x44] sm:$0xf]
    %v953 = vld [vmem:[#allocation10 + $0x48] sm:$0xf]
    %v954 = vld [vmem:[#allocation10 + $0x4c] sm:$0xf]
    %v955 = vld [vmem:[#allocation10 + $0x50] sm:$0xf]
    %v956 = vld [vmem:[#allocation10 + $0x54] sm:$0xf]
    %v957 = vld [vmem:[#allocation10 + $0x58] sm:$0xf]
    %v958 = vld [vmem:[#allocation10 + $0x5c] sm:$0xf]
    %v959 = vld [vmem:[#allocation10 + $0x60] sm:$0xf]
    %v960 = vld [vmem:[#allocation10 + $0x64] sm:$0xf]
    %v961 = vld [vmem:[#allocation10 + $0x68] sm:$0xf]
    %v962 = vld [vmem:[#allocation10 + $0x6c] sm:$0xf]
    %v963 = vld [vmem:[#allocation10 + $0x70] sm:$0xf]
    %v964 = vld [vmem:[#allocation10 + $0x74] sm:$0xf]
    %v965 = vld [vmem:[#allocation10 + $0x78] sm:$0xf]
    %v966 = vld [vmem:[#allocation10 + $0x7c] sm:$0xf]
    %v967 = vld [vmem:[#allocation10 + $0x80] sm:$0xf]
    %v968 = vld [vmem:[#allocation10 + $0x84] sm:$0xf]
    %v969 = vld [vmem:[#allocation10 + $0x88] sm:$0xf]
    %v970 = vld [vmem:[#allocation10 + $0x8c] sm:$0xf]
    %v971 = vld [vmem:[#allocation10 + $0x90] sm:$0xf]
    %v972 = vld [vmem:[#allocation10 + $0x94] sm:$0x3]
    %v973 = vld [vmem:[%s6] sm:$0x1]
    %v975 = vlaneseq
    %v976 = vshrl.u32 %v975, 7
    %v977 = vsub.s32 0, %v976
    %v978 = vrot.slane %v973, %v977
    %v1018 = vunpack.c.l.b16 %v935
    %v1019 = vunpack.c.l.b16 %v936
    %v1020 = vunpack.c.l.b16 %v937
    %v1021 = vunpack.c.l.b16 %v938
    %v1022 = vunpack.c.l.b16 %v939
    %v1023 = vunpack.c.l.b16 %v940
    %v1024 = vunpack.c.l.b16 %v941
    %v1025 = vunpack.c.l.b16 %v942
    %v1026 = vunpack.c.l.b16 %v943
    %v1027 = vunpack.c.l.b16 %v944
    %v1028 = vunpack.c.l.b16 %v945
    %v1029 = vunpack.c.l.b16 %v946
    %v1030 = vunpack.c.l.b16 %v947
    %v1031 = vunpack.c.l.b16 %v948
    %v1032 = vunpack.c.l.b16 %v949
    %v1033 = vunpack.c.l.b16 %v950
    %v1034 = vunpack.c.l.b16 %v951
    %v1035 = vunpack.c.l.b16 %v952
    %v1036 = vunpack.c.l.b16 %v953
    %v1037 = vunpack.c.l.b16 %v954
    %v1038 = vunpack.c.l.b16 %v955
    %v1039 = vunpack.c.l.b16 %v956
    %v1040 = vunpack.c.l.b16 %v957
    %v1041 = vunpack.c.l.b16 %v958
    %v1042 = vunpack.c.l.b16 %v959
    %v1043 = vunpack.c.l.b16 %v960
    %v1044 = vunpack.c.l.b16 %v961
    %v1045 = vunpack.c.l.b16 %v962
    %v1046 = vunpack.c.l.b16 %v963
    %v1047 = vunpack.c.l.b16 %v964
    %v1048 = vunpack.c.l.b16 %v965
    %v1049 = vunpack.c.l.b16 %v966
    %v1050 = vunpack.c.l.b16 %v967
    %v1051 = vunpack.c.l.b16 %v968
    %v1052 = vunpack.c.l.b16 %v969
    %v1053 = vunpack.c.l.b16 %v970
    %v1054 = vunpack.c.l.b16 %v971
    %v1055 = vunpack.c.l.b16 %v972
    %v1056 = vpack.c.b16 %v1019, %v1018
    %v1057 = vpack.c.b16 %v1021, %v1020
    %v1058 = vpack.c.b16 %v1023, %v1022
    %v1059 = vpack.c.b16 %v1025, %v1024
    %v1060 = vpack.c.b16 %v1027, %v1026
    %v1061 = vpack.c.b16 %v1029, %v1028
    %v1062 = vpack.c.b16 %v1031, %v1030
    %v1063 = vpack.c.b16 %v1033, %v1032
    %v1064 = vpack.c.b16 %v1035, %v1034
    %v1065 = vpack.c.b16 %v1037, %v1036
    %v1066 = vpack.c.b16 %v1039, %v1038
    %v1067 = vpack.c.b16 %v1041, %v1040
    %v1068 = vpack.c.b16 %v1043, %v1042
    %v1069 = vpack.c.b16 %v1045, %v1044
    %v1070 = vpack.c.b16 %v1047, %v1046
    %v1071 = vpack.c.b16 %v1049, %v1048
    %v1072 = vpack.c.b16 %v1051, %v1050
    %v1073 = vpack.c.b16 %v1053, %v1052
    %v1074 = vpack.c.b16 %v1055, %v1054
    %vm1093 = vcmask 359424
    %v1095 = vsel %vm1093, %v934, 0
    %v1098 = vsel %vm141, %v1074, 0
    %1100 = vmatprep.subr.bf16.mxu0 0
    %1101 = vmatpush1.bf16.msra.mxu0 %v1063
    %1102 = vmatprep.subr.bf16.mxu0 0
    %1103 = vmatpush1.bf16.msra.mxu0 %v1062
    %1104 = vmatprep.subr.bf16.mxu0 0
    %1105 = vmatpush1.bf16.msra.mxu0 %v1061
    %1106 = vmatprep.subr.bf16.mxu0 0
    %1107 = vmatpush1.bf16.msra.mxu0 %v1060
    %1108 = vmatprep.subr.bf16.mxu0 0
    %1109 = vmatpush1.bf16.msra.mxu0 %v1059
    %1110 = vmatprep.subr.bf16.mxu0 0
    %1111 = vmatpush1.bf16.msra.mxu0 %v1058
    %1112 = vmatprep.subr.bf16.mxu0 0
    %1113 = vmatpush1.bf16.msra.mxu0 %v1057
    %1114 = vmatprep.subr.bf16.mxu0 0
    %1115 = vmatpush1.bf16.msra.mxu0 %v1056
    %1116 = vmatprep.subr.bf16.mxu0 0
    %1117 = vmatpush2.bf16.msra.mxu0 %v1071
    %1118 = vmatprep.subr.bf16.mxu0 0
    %1119 = vmatpush2.bf16.msra.mxu0 %v1070
    %1120 = vmatprep.subr.bf16.mxu0 0
    %1121 = vmatpush2.bf16.msra.mxu0 %v1069
    %1122 = vmatprep.subr.bf16.mxu0 0
    %1123 = vmatpush2.bf16.msra.mxu0 %v1068
    %1124 = vmatprep.subr.bf16.mxu0 0
    %1125 = vmatpush2.bf16.msra.mxu0 %v1067
    %1126 = vmatprep.subr.bf16.mxu0 0
    %1127 = vmatpush2.bf16.msra.mxu0 %v1066
    %1128 = vmatprep.subr.bf16.mxu0 0
    %1129 = vmatpush2.bf16.msra.mxu0 %v1065
    %1130 = vmatprep.subr.bf16.mxu0 0
    %1131 = vmatpush2.bf16.msra.mxu0 %v1064
    %1132 = vmatprep.mubr.bf16.mxu0 %v933
    %1133 = vmatmul.mubr.bf16.gmra.mxu0 %v932
    %v1134 = vpop.f32.mrf.mxu0
    %v1135 = vadd.f32 %v978, %v1134
    %v1136 = vpop.f32.mrf.mxu0
    %v1137 = vpop.f32.mrf.mxu0
    %v1138 = vpop.f32.mrf.mxu0
    %1139 = vdwg.mxu0
    %1140 = vmatprep.subr.bf16.mxu0 0
    %1141 = vmatpush1.bf16.msra.mxu0 0
    %1142 = vmatprep.subr.bf16.mxu0 0
    %1143 = vmatpush1.bf16.msra.mxu0 0
    %1144 = vmatprep.subr.bf16.mxu0 0
    %1145 = vmatpush1.bf16.msra.mxu0 0
    %1146 = vmatprep.subr.bf16.mxu0 0
    %1147 = vmatpush1.bf16.msra.mxu0 0
    %1148 = vmatprep.subr.bf16.mxu0 0
    %1149 = vmatpush1.bf16.msra.mxu0 0
    %1150 = vmatprep.subr.bf16.mxu0 0
    %1151 = vmatpush1.bf16.msra.mxu0 %v1098
    %1152 = vmatprep.subr.bf16.mxu0 0
    %1153 = vmatpush1.bf16.msra.mxu0 %v1073
    %1154 = vmatprep.subr.bf16.mxu0 0
    %1155 = vmatpush1.bf16.msra.mxu0 %v1072
    %1156 = vmatprep.subr.bf16.mxu0 0
    %1157 = vmatpush2.bf16.msra.mxu0 0
    %1158 = vmatprep.subr.bf16.mxu0 0
    %1159 = vmatpush2.bf16.msra.mxu0 0
    %1160 = vmatprep.subr.bf16.mxu0 0
    %1161 = vmatpush2.bf16.msra.mxu0 0
    %1162 = vmatprep.subr.bf16.mxu0 0
    %1163 = vmatpush2.bf16.msra.mxu0 0
    %1164 = vmatprep.subr.bf16.mxu0 0
    %1165 = vmatpush2.bf16.msra.mxu0 0
    %1166 = vmatprep.subr.bf16.mxu0 0
    %1167 = vmatpush2.bf16.msra.mxu0 0
    %1168 = vmatprep.subr.bf16.mxu0 0
    %1169 = vmatpush2.bf16.msra.mxu0 0
    %1170 = vmatprep.subr.bf16.mxu0 0
    %1171 = vmatpush2.bf16.msra.mxu0 0
    %1172 = vmatprep.mubr.bf16.mxu0 0
    %1173 = vmatmul.mubr.bf16.gmra.mxu0 %v1095
    %v1174 = vpop.f32.mrf.mxu0
    %v1175 = vadd.f32 %v1135, %v1174
    %v1176 = vpop.f32.mrf.mxu0
    %v1177 = vpop.f32.mrf.mxu0
    %v1178 = vpop.f32.mrf.mxu0
    %1179 = vdwg.mxu0
    %v1180 = vtanh.pop %v1175
    %1181 = vst [vmem:[#allocation11] sm:$0xff] %v1180
    // Predicated region
    $region50: #{tpu_custom_call.1} parent=1 // pred_check
      _
    $region51: #{tpu_custom_call.1} parent=1 // pred_check_branch
      %1183 = sbr.rel (0) target = $region53
    $region52: #{tpu_custom_call.1} parent=1 // pred_region
      %s1185 = ssub.s32 128, 128
      %1186 = vsyncadd [#allocation4], %s1185
      %s1188 = sshll.u32 [#allocation11], 4
      %s1189 = int_to_ptr.vmem [resolvable:$true] %s1188
      %1191 = dma.vmem_to_hbm [thread:$0]  %s1189, 128, %s7, [#allocation4]
    $region53: #{tpu_custom_call.1} parent=1 // pred_fallthru
      _
    // Predicated region
    $region54: #{tpu_custom_call.1} parent=1 // pred_check
      _
    $region55: #{tpu_custom_call.1} parent=1 // pred_check_branch
      %1193 = sbr.rel (0) target = $region57
    $region56: #{tpu_custom_call.1} parent=1 // pred_region
      %1194 = dma.done [#allocation4], 128
    $region57: #{tpu_custom_call.1} parent=1 // pred_fallthru
      _
    %1195 = vsyncpa [#allocation3], 1
    %1196 = vsyncpa [#allocation6], 1
    %1197 = vsyncpa [#allocation9], 1
    %1198 = vsyncpa [#allocation4], 1

</llo_original>
